<compile_context>
chip_gen: v7x
topology: tpu7x:2x2x1
jax: 0.10.0
libtpu: 0.0.40
codegen_flags: <defaults>
</compile_context>

<pallas_src>
import math

import jax
import jax.numpy as jnp
from jax.experimental import pallas as pl
from jax.experimental.pallas import tpu as pltpu

N_BANDS = 177
_DEFAULT_TILE_R = 4096  # rows per grid step; multiple of 8 and 128,
                        # ~2.9 MiB f32 per buffer -> fits scoped VMEM everywhere.


def _band_net_kernel(x_ref, w_ref, b_ref, o_ref):
    # x_ref: [TILE_R, N_BANDS] (native dtype), w_ref: [1, N_BANDS] f32 (resident),
    # b_ref: [1] f32 in SMEM, o_ref: [1, TILE_R] lane-dense output row.
    x = x_ref[...].astype(jnp.float32)          # in-register upcast (no HBM cost)
    w = w_ref[...]                              # broadcast over sublanes
    acc = jnp.sum(x * w, axis=-1)               # VPU mul + cross-lane reduce -> [TILE_R]
    o_ref[...] = (acc + b_ref[0])[None, :].astype(o_ref.dtype)


def band_net_pallas(x, weight, bias, *, tile_r=_DEFAULT_TILE_R):
    """Equivalent of nn.Linear(N_BANDS, 1) over the last axis of x.

    x:      [..., N_BANDS]  (any float dtype; streamed as-is)
    weight: [1, N_BANDS]    (PyTorch Linear layout [out_features, in_features])
    bias:   [1]
    returns [..., 1] in x.dtype
    """
    lead_shape = x.shape[:-1]
    rows = int(math.prod(lead_shape))
    x2d = x.reshape(rows, N_BANDS)

    # Tile selection: big row tiles for pipelining; for small inputs use a
    # single full-array block (block dims == array dims, so no (8,128) issue).
    tile = tile_r if rows >= tile_r else rows
    n_tiles = pl.cdiv(rows, tile)

    w = weight.reshape(1, N_BANDS).astype(jnp.float32)
    b = bias.reshape(1).astype(jnp.float32)
    out_dtype = x.dtype

    cost = pl.CostEstimate(
        flops=2 * rows * N_BANDS,
        transcendentals=0,
        bytes_accessed=(rows * N_BANDS * x.dtype.itemsize
                        + N_BANDS * 4 + 4
                        + rows * jnp.dtype(out_dtype).itemsize),
    )

    out = pl.pallas_call(
        _band_net_kernel,
        out_shape=jax.ShapeDtypeStruct((n_tiles, tile), out_dtype),
        grid_spec=pltpu.PrefetchScalarGridSpec(
            num_scalar_prefetch=0,
            grid=(n_tiles,),
            in_specs=[
                # x: row tile, streamed & double-buffered each grid step.
                pl.BlockSpec((tile, N_BANDS), lambda i: (i, 0)),
                # weight: constant block index -> DMA'd once, stays resident.
                pl.BlockSpec((1, N_BANDS), lambda i: (0, 0)),
                # bias: scalar in SMEM.
                pl.BlockSpec(memory_space=pltpu.MemorySpace.SMEM),
            ],
            # Lane-dense output: each step writes one full (1, TILE_R) row.
            out_specs=pl.BlockSpec((1, tile), lambda i: (i, 0)),
        ),
        compiler_params=pltpu.CompilerParams(
            dimension_semantics=("parallel",),  # shard row tiles across TCs (v7x)
        ),
        cost_estimate=cost,
    )(x2d, w, b)

    # Drop padded tail rows (last partial input block writes into padded output
    # slots only), restore leading dims.
    return out.reshape(-1)[:rows].reshape(*lead_shape, 1)


def init_params(key):
    """Deterministic init matching nn.Linear(177, 1): U(-1/sqrt(in), 1/sqrt(in))."""
    kw, kb = jax.random.split(key)
    bound = 1.0 / jnp.sqrt(jnp.float32(N_BANDS))
    weight = jax.random.uniform(kw, (1, N_BANDS), jnp.float32, -bound, bound)
    bias = jax.random.uniform(kb, (1,), jnp.float32, -bound, bound)
    return weight, bias


if __name__ == "__main__":
    key = jax.random.PRNGKey(0)
    k_x, k_x2, k_p = jax.random.split(key, 3)
    weight, bias = init_params(k_p)

    # Small example consistent with the module: batch=2, seq=8, bands=177.
    x = jax.random.normal(k_x, (2, 8, N_BANDS), dtype=jnp.float32)
    y = jax.block_until_ready(band_net_pallas(x, weight, bias))
    y_ref = x @ weight.T + bias
    assert y.shape == (2, 8, 1), y.shape
    assert jnp.allclose(y, y_ref, atol=1e-5, rtol=1e-5)

    # Exercise the gridded path (rows > TILE_R, partial final input block).
    x2 = jax.random.normal(k_x2, (1, 4500, N_BANDS), dtype=jnp.float32)
    y2 = jax.block_until_ready(band_net_pallas(x2, weight, bias))
    y2_ref = x2 @ weight.T + bias
    assert y2.shape == (1, 4500, 1), y2.shape
    assert jnp.allclose(y2, y2_ref, atol=1e-4, rtol=1e-5)

    print("KERNEL_OK")
</pallas_src>

<mosaic_0001>
module attributes {stable_mosaic.version = 11 : i64} {
  func.func @_band_net_kernel(%arg0: i32, %arg1: memref<16x177xf32, #tpu.memory_space<vmem>>, %arg2: memref<1x177xf32, #tpu.memory_space<vmem>>, %arg3: memref<1xf32, #tpu.memory_space<smem>>, %arg4: memref<1x16xf32, #tpu.memory_space<vmem>>) attributes {dimension_semantics = [#tpu.dimension_semantics<parallel>], iteration_bounds = array<i64: 1>, scalar_prefetch = 0 : i64, scratch_operands = 0 : i64, tpu.core_type = #tpu.core_type<tc>, window_params = [{transform_indices = @transform_0, window_bounds = array<i64: 16, 177>}, {pipeline_mode = #tpu.pipeline_mode<synchronous>, transform_indices = @transform_1, window_bounds = array<i64: 1, 177>}, {transform_indices = @transform_2, window_bounds = array<i64: 1>}, {transform_indices = @transform_3, window_bounds = array<i64: 1, 16>}]} {
    %c0 = arith.constant 0 : index
    %c0_0 = arith.constant 0 : index
    %0 = vector.load %arg1[%c0, %c0_0] : memref<16x177xf32, #tpu.memory_space<vmem>>, vector<16x177xf32>
    %c0_1 = arith.constant 0 : index
    %c0_2 = arith.constant 0 : index
    %1 = vector.load %arg2[%c0_1, %c0_2] : memref<1x177xf32, #tpu.memory_space<vmem>>, vector<1x177xf32>
    %2 = vector.broadcast %1 : vector<1x177xf32> to vector<16x177xf32>
    %3 = arith.mulf %0, %2 : vector<16x177xf32>
    %cst = arith.constant dense<0.000000e+00> : vector<16xf32>
    %4 = vector.multi_reduction <add>, %3, %cst [1] : vector<16x177xf32> to vector<16xf32>
    %c0_3 = arith.constant 0 : index
    %5 = memref.load %arg3[%c0_3] : memref<1xf32, #tpu.memory_space<smem>>
    %6 = vector.broadcast %5 : f32 to vector<16xf32>
    %7 = arith.addf %4, %6 : vector<16xf32>
    %8 = vector.shape_cast %7 : vector<16xf32> to vector<1x16xf32>
    %c0_4 = arith.constant 0 : index
    %c0_5 = arith.constant 0 : index
    %9 = vector.load %arg4[%c0_4, %c0_5] : memref<1x16xf32, #tpu.memory_space<vmem>>, vector<1x16xf32>
    tpu.vector_store %arg4[%c0_4, %c0_5], %8 {strides = array<i32>} : memref<1x16xf32, #tpu.memory_space<vmem>>, vector<1x16xf32>,
    return
  }
  func.func @transform_0(%arg0: i32) -> (i32, i32) {
    %c0_i32 = arith.constant 0 : i32
    %c0_i32_0 = arith.constant 0 : i32
    return %arg0, %c0_i32 : i32, i32
  }
  func.func @transform_1(%arg0: i32) -> (i32, i32) {
    %c0_i32 = arith.constant 0 : i32
    %c0_i32_0 = arith.constant 0 : i32
    %c0_i32_1 = arith.constant 0 : i32
    return %c0_i32, %c0_i32_0 : i32, i32
  }
  func.func @transform_2(%arg0: i32) -> i32 {
    %c0_i32 = arith.constant 0 : i32
    %c0_i32_0 = arith.constant 0 : i32
    return %c0_i32 : i32
  }
  func.func @transform_3(%arg0: i32) -> (i32, i32) {
    %c0_i32 = arith.constant 0 : i32
    %c0_i32_0 = arith.constant 0 : i32
    return %arg0, %c0_i32 : i32, i32
  }
}

</mosaic_0001>

<llo_original>
// kernel: tpu_custom_call.1
$region0: #{tpu_custom_call.1}
  #allocation0 [shape = 'u32[]', space=smem, size = 0x4, offset = 0x4, fixed_abs, tag = 'smem constant byte address 0x4 - core index']
  #allocation1 [shape = 'u32[144,128]{1,0:T(1,128)}', space=vmem, size = 0x12000, scoped, tag = 'internal scratch']
  #allocation2 [shape = 'f32[1]{0:T(128)S(6)}', space=smem, size = 0x200, scoped, tag = 'scoped memory for tpu_custom_call.1']
  %s0 = inlined_call_operand.hbm [shape: f32[16,177], index: 0, kind: input, shape index: {}]
  %s1 = inlined_call_operand.vmem [shape: f32[1,177], index: 1, kind: input, shape index: {}]
  %s2 = inlined_call_operand.<no memory space> [shape: f32[1], index: 2, kind: input, shape index: {}]
  %s3 = inlined_call_operand.hbm [shape: f32[1,16], index: 3, kind: output, shape index: {}]
  %s4 = sld [smem:[#allocation0]]
  $region26: #{tpu_custom_call.1} parent=0
    _
  %s6 = ssub.s32 1, %s4
  %s7 = scalar_select 0, %s6, %s4
  %8 = sst [smem:[#allocation2]] %s2
  $region1: #{tpu_custom_call.1} parent=0
    #allocation3 [shape = 'u8[16384]{0}', space=vmem, size = 0x4000, scoped, tag = 'input window, operand 0, single buffered']
    #allocation4 [shape = 's32[1]{0}', space=sflag, size = 0x4, scoped, tag = 'scoped memory for tpu_custom_call.1']
    #allocation5 [shape = 's32[1]{0}', space=sflag, size = 0x4, scoped, tag = 'scoped memory for tpu_custom_call.1']
    #allocation6 [shape = 'u8[512]{0}', space=vmem, size = 0x400, scoped, tag = 'output window, operand 0, single buffered']
    %9 = vsyncpa [#allocation4], 0
    %10 = vsyncpa [#allocation5], 0
    // Predicated region
    $region2: #{tpu_custom_call.1} parent=1 // pred_check
      _
    $region3: #{tpu_custom_call.1} parent=1 // pred_check_branch
      %12 = sbr.rel (0) target = $region5
    $region4: #{tpu_custom_call.1} parent=1 // pred_region
      %s14 = ssub.s32 512, 512
      %15 = vsyncadd [#allocation4], %s14
      %s16 = sshll.u32 [#allocation3], 4
      %s17 = int_to_ptr.vmem [resolvable:$true] %s16
      %22 = dma.hbm_to_vmem [thread:$0]  %s0, 512, %s17, [#allocation4], 256, 256, 16
    $region5: #{tpu_custom_call.1} parent=1 // pred_fallthru
      _
    // Predicated region
    $region6: #{tpu_custom_call.1} parent=1 // pred_check
      _
    $region7: #{tpu_custom_call.1} parent=1 // pred_check_branch
      %24 = sbr.rel (0) target = $region9
    $region8: #{tpu_custom_call.1} parent=1 // pred_region
      _
    $region9: #{tpu_custom_call.1} parent=1 // pred_fallthru
      _
    // Predicated region
    $region10: #{tpu_custom_call.1} parent=1 // pred_check
      _
    $region11: #{tpu_custom_call.1} parent=1 // pred_check_branch
      %26 = sbr.rel (0) target = $region13
    $region12: #{tpu_custom_call.1} parent=1 // pred_region
      _
    $region13: #{tpu_custom_call.1} parent=1 // pred_fallthru
      _
    // Predicated region
    $region14: #{tpu_custom_call.1} parent=1 // pred_check
      _
    $region15: #{tpu_custom_call.1} parent=1 // pred_check_branch
      %28 = sbr.rel (0) target = $region17
    $region16: #{tpu_custom_call.1} parent=1 // pred_region
      %29 = dma.done [#allocation4], 512
    $region17: #{tpu_custom_call.1} parent=1 // pred_fallthru
      _
    %v30 = vld [vmem:[#allocation3] sm:$0xff]
    %v31 = vld [vmem:[#allocation3 + $0x8] sm:$0xff]
    %v32 = vld [vmem:[#allocation3 + $0x10] sm:$0xff]
    %v33 = vld [vmem:[#allocation3 + $0x18] sm:$0xff]
    %v34 = vld [vmem:[%s1] sm:$0x3]
    %v36 = vlaneseq
    %v37 = vshrl.u32 %v36, 7
    %v38 = vsub.s32 0, %v37
    %v39 = vrot.slane %v34, %v38
    %v40 = vlaneseq
    %v41 = vshrl.u32 %v40, 7
    %v42 = vsub.s32 1, %v41
    %v43 = vrot.slane %v34, %v42
    %v46 = vmul.f32 %v30, %v39
    %v47 = vmul.f32 %v31, %v43
    %v48 = vmul.f32 %v32, %v39
    %v49 = vmul.f32 %v33, %v43
    %vm50 = vcmask 400384
    %v51 = vsel %vm50, %v47, 0.0
    %v52 = vadd.f32 %v46, %v51
    %53 = vadd.xlane.f32.xlu0 %v52
    %v54 = vpop.xlane.xlu0 %53
    %v55 = vsel %vm50, %v49, 0.0
    %v56 = vadd.f32 %v48, %v55
    %57 = vadd.xlane.f32.xlu0 %v56
    %v58 = vpop.xlane.xlu0 %57
    %s59 = sld [smem:[#allocation2]]
    %v60 = vstv %s59
    %v61 = vadd.f32 %v54, %v60
    %v62 = vadd.f32 %v58, %v60
    %v65 = vlaneseq
    %v66 = vand.u32 %v65, 127
    %v67 = vlaneseq
    %v68 = vshrl.u32 %v67, 7
    %v69 = vsub.s32 %v66, %v68
    %v70 = vrot.slane %v61, %v69
    %v71 = vadd.s32 %v66, 4294967288
    %v72 = vlaneseq
    %v73 = vshrl.u32 %v72, 7
    %v74 = vsub.s32 %v71, %v73
    %v75 = vrot.slane %v62, %v74
    %vm76 = vcmask 130112
    %v77 = vsel %vm76, %v75, %v70
    %vm79 = vcmask 122880
    %80 = vst.msk [vmem:[#allocation6] sm:$0x1] %vm79, %v77
    // Predicated region
    $region18: #{tpu_custom_call.1} parent=1 // pred_check
      _
    $region19: #{tpu_custom_call.1} parent=1 // pred_check_branch
      %82 = sbr.rel (0) target = $region21
    $region20: #{tpu_custom_call.1} parent=1 // pred_region
      %s84 = ssub.s32 16, 16
      %85 = vsyncadd [#allocation5], %s84
      %s87 = sshll.u32 [#allocation6], 4
      %s88 = int_to_ptr.vmem [resolvable:$true] %s87
      %90 = dma.vmem_to_hbm [thread:$0]  %s88, 16, %s3, [#allocation5]
    $region21: #{tpu_custom_call.1} parent=1 // pred_fallthru
      _
    // Predicated region
    $region22: #{tpu_custom_call.1} parent=1 // pred_check
      _
    $region23: #{tpu_custom_call.1} parent=1 // pred_check_branch
      %92 = sbr.rel (0) target = $region25
    $region24: #{tpu_custom_call.1} parent=1 // pred_region
      %93 = dma.done [#allocation5], 16
    $region25: #{tpu_custom_call.1} parent=1 // pred_fallthru
      _
    %94 = vsyncpa [#allocation4], 1
    %95 = vsyncpa [#allocation5], 1

</llo_original>
